<compile_context>
chip_gen: v5e
topology: v5e:2x2
jax: 0.10.0
libtpu: 0.0.40
codegen_flags: <defaults>
</compile_context>

<pallas_src>
import jax
import jax.numpy as jnp
from jax import lax
from jax.experimental import pallas as pl
from jax.experimental.pallas import tpu as pltpu

_EPS = 1e-8  # torch.nn.functional.cosine_similarity default


def _make_kernel(hw: int, tn: int, ragged: bool):
    # Python float -> inlined literal (no captured array constant).
    eps2 = float(_EPS) * float(_EPS)

    def kernel(x_ref, y_ref, o_ref):
        j = pl.program_id(1)  # spatial-tile index (reduction axis)

        @pl.when(j == 0)
        def _():
            o_ref[...] = jnp.zeros_like(o_ref)

        x = x_ref[...].astype(jnp.float32)  # (TB, C, tn): channels on sublanes
        y = y_ref[...].astype(jnp.float32)

        w12 = jnp.sum(x * y, axis=1, keepdims=True)  # (TB, 1, tn)
        w1 = jnp.sum(x * x, axis=1, keepdims=True)
        w2 = jnp.sum(y * y, axis=1, keepdims=True)

        # cos = w12 / (max(||x||, eps) * max(||y||, eps))
        inv = lax.rsqrt(jnp.maximum(w1, eps2)) * lax.rsqrt(jnp.maximum(w2, eps2))
        loss = 1.0 - w12 * inv  # (TB, 1, tn) per-lane contributions

        if not ragged:
            o_ref[...] += loss
        else:
            last = pl.num_programs(1) - 1

            @pl.when(j < last)
            def _():
                o_ref[...] += loss

            @pl.when(j == last)
            def _():
                # Mask lanes past the real spatial extent; select happens
                # before accumulation so garbage never mixes in.
                lane = j * tn + lax.broadcasted_iota(jnp.int32, loss.shape, 2)
                o_ref[...] += jnp.where(lane < hw, loss, 0.0)

    return kernel


def cosine_loss(x, y):
    """(1 - cosine_similarity(x, y, dim=1)).mean() for NCHW inputs."""
    assert x.shape == y.shape
    b, c, h, w = x.shape
    hw = h * w

    # Free layout change (no HBM round trip): NCHW -> (B, C, H*W).
    x3 = x.reshape(b, c, hw)
    y3 = y.reshape(b, c, hw)

    itemsize = jnp.dtype(x.dtype).itemsize

    # Generation-aware VMEM budget for the pipelined blocks.
    try:
        vmem_cap = int(pltpu.get_tpu_info().vmem_capacity_bytes)
    except Exception:  # interpret mode / non-TPU fallback
        vmem_cap = 64 * 1024 * 1024  # conservative (v7x)
    budget = min(vmem_cap // 2, 48 * 1024 * 1024)

    pipeline_factor = 4  # 2 inputs x 2 pipeline buffers
    per_row_bytes = c * hw * itemsize  # one batch row, one input
    total_bytes = 2 * b * per_row_bytes

    if pipeline_factor * per_row_bytes <= budget:
        # Whole spatial extent per block; fold batch rows to amortize the
        # per-grid-step overhead.
        tn, nj = hw, 1
        max_tb = b
        if b >= 2 and total_bytes > (8 << 20):
            # Keep >= 2 batch grid steps so v7x can shard across both cores.
            max_tb = max(1, b // 2)
        tb = 1
        for d in range(max_tb, 0, -1):
            if b % d == 0 and pipeline_factor * d * per_row_bytes <= budget:
                tb = d
                break
    else:
        # One batch row per block; tile the spatial axis in 128-lane multiples
        # sized to fill the VMEM budget (no artificial 8192 cap).
        tb = 1
        lane_budget = budget // (pipeline_factor * c * itemsize)
        tn = max(128, (lane_budget // 128) * 128)
        nj = pl.cdiv(hw, tn)

    ragged = (hw % tn) != 0
    grid = (b // tb, nj)

    # Tell the compiler about the VMEM we actually need.
    need = pipeline_factor * tb * c * tn * itemsize + 4 * tb * tn * 4
    vmem_limit = int(min(vmem_cap, max(32 << 20, need + (8 << 20))))

    out = pl.pallas_call(
        _make_kernel(hw, tn, ragged),
        out_shape=jax.ShapeDtypeStruct((b, 1, tn), jnp.float32),
        grid_spec=pltpu.PrefetchScalarGridSpec(
            num_scalar_prefetch=0,
            grid=grid,
            in_specs=[
                pl.BlockSpec((tb, c, tn), lambda i, j: (i, 0, j)),
                pl.BlockSpec((tb, c, tn), lambda i, j: (i, 0, j)),
            ],
            out_specs=pl.BlockSpec((tb, 1, tn), lambda i, j: (i, 0, 0)),
        ),
        compiler_params=pltpu.CompilerParams(
            dimension_semantics=("parallel", "arbitrary"),
            vmem_limit_bytes=vmem_limit,
        ),
    )(x3, y3)

    # Tiny final reduction over the (B, 1, tn) lane partials.
    return jnp.sum(out) / jnp.float32(b * hw)


def _reference(x, y):
    xf = x.astype(jnp.float32)
    yf = y.astype(jnp.float32)
    w12 = jnp.sum(xf * yf, axis=1)
    w1 = jnp.sum(xf * xf, axis=1)
    w2 = jnp.sum(yf * yf, axis=1)
    eps = jnp.float32(_EPS)
    cos = w12 / (jnp.maximum(jnp.sqrt(w1), eps) * jnp.maximum(jnp.sqrt(w2), eps))
    return jnp.mean(1.0 - cos)


if __name__ == "__main__":
    key = jax.random.PRNGKey(0)
    kx, ky = jax.random.split(key)
    # NCHW inputs; cosine_similarity(dim=1) reduces over channels.
    x = jax.random.normal(kx, (2, 4, 16, 16), dtype=jnp.float32)
    y = jax.random.normal(ky, (2, 4, 16, 16), dtype=jnp.float32)

    out = jax.block_until_ready(cosine_loss(x, y))
    ref = jax.block_until_ready(_reference(x, y))

    assert jnp.allclose(out, ref, rtol=1e-5, atol=1e-5), (out, ref)
    print("KERNEL_OK")
</pallas_src>

<mosaic_0001>
module attributes {stable_mosaic.version = 11 : i64} {
  func.func @kernel(%arg0: i32, %arg1: i32, %arg2: memref<2x4x256xf32, #tpu.memory_space<vmem>>, %arg3: memref<2x4x256xf32, #tpu.memory_space<vmem>>, %arg4: memref<2x1x256xf32, #tpu.memory_space<vmem>>) attributes {dimension_semantics = [#tpu.dimension_semantics<parallel>, #tpu.dimension_semantics<arbitrary>], iteration_bounds = array<i64: 1, 1>, scalar_prefetch = 0 : i64, scratch_operands = 0 : i64, tpu.core_type = #tpu.core_type<tc>, window_params = [{transform_indices = @transform_0, window_bounds = array<i64: 2, 4, 256>}, {transform_indices = @transform_1, window_bounds = array<i64: 2, 4, 256>}, {transform_indices = @transform_2, window_bounds = array<i64: 2, 1, 256>}]} {
    %c0_i32 = arith.constant 0 : i32
    %0 = arith.cmpi eq, %arg1, %c0_i32 : i32
    %1 = arith.extui %0 : i1 to i32
    %c0_i32_0 = arith.constant 0 : i32
    %2 = arith.cmpi ne, %1, %c0_i32_0 : i32
    scf.if %2 {
      %cst_17 = arith.constant 0.000000e+00 : f32
      %27 = vector.broadcast %cst_17 : f32 to vector<2x1x256xf32>
      %c0_18 = arith.constant 0 : index
      %c0_19 = arith.constant 0 : index
      %c0_20 = arith.constant 0 : index
      %28 = vector.load %arg4[%c0_18, %c0_19, %c0_20] : memref<2x1x256xf32, #tpu.memory_space<vmem>>, vector<2x1x256xf32>
      tpu.vector_store %arg4[%c0_18, %c0_19, %c0_20], %27 {strides = array<i32>} : memref<2x1x256xf32, #tpu.memory_space<vmem>>, vector<2x1x256xf32>,
    } else {
    }
    %c0 = arith.constant 0 : index
    %c0_1 = arith.constant 0 : index
    %c0_2 = arith.constant 0 : index
    %3 = vector.load %arg2[%c0, %c0_1, %c0_2] : memref<2x4x256xf32, #tpu.memory_space<vmem>>, vector<2x4x256xf32>
    %c0_3 = arith.constant 0 : index
    %c0_4 = arith.constant 0 : index
    %c0_5 = arith.constant 0 : index
    %4 = vector.load %arg3[%c0_3, %c0_4, %c0_5] : memref<2x4x256xf32, #tpu.memory_space<vmem>>, vector<2x4x256xf32>
    %5 = arith.mulf %3, %4 : vector<2x4x256xf32>
    %cst = arith.constant dense<0.000000e+00> : vector<2x256xf32>
    %6 = vector.multi_reduction <add>, %5, %cst [1] : vector<2x4x256xf32> to vector<2x256xf32>
    %7 = vector.shape_cast %6 : vector<2x256xf32> to vector<2x1x256xf32>
    %8 = arith.mulf %3, %3 : vector<2x4x256xf32>
    %cst_6 = arith.constant dense<0.000000e+00> : vector<2x256xf32>
    %9 = vector.multi_reduction <add>, %8, %cst_6 [1] : vector<2x4x256xf32> to vector<2x256xf32>
    %10 = vector.shape_cast %9 : vector<2x256xf32> to vector<2x1x256xf32>
    %11 = arith.mulf %4, %4 : vector<2x4x256xf32>
    %cst_7 = arith.constant dense<0.000000e+00> : vector<2x256xf32>
    %12 = vector.multi_reduction <add>, %11, %cst_7 [1] : vector<2x4x256xf32> to vector<2x256xf32>
    %13 = vector.shape_cast %12 : vector<2x256xf32> to vector<2x1x256xf32>
    %cst_8 = arith.constant 1.000000e-16 : f32
    %14 = vector.broadcast %cst_8 : f32 to vector<2x1x256xf32>
    %15 = arith.maximumf %10, %14 : vector<2x1x256xf32>
    %16 = math.rsqrt %15 : vector<2x1x256xf32>
    %cst_9 = arith.constant 1.000000e-16 : f32
    %17 = vector.broadcast %cst_9 : f32 to vector<2x1x256xf32>
    %18 = arith.maximumf %13, %17 : vector<2x1x256xf32>
    %19 = math.rsqrt %18 : vector<2x1x256xf32>
    %20 = arith.mulf %16, %19 : vector<2x1x256xf32>
    %21 = arith.mulf %7, %20 : vector<2x1x256xf32>
    %cst_10 = arith.constant 1.000000e+00 : f32
    %22 = vector.broadcast %cst_10 : f32 to vector<2x1x256xf32>
    %23 = arith.subf %22, %21 : vector<2x1x256xf32>
    %c0_11 = arith.constant 0 : index
    %c0_12 = arith.constant 0 : index
    %c0_13 = arith.constant 0 : index
    %24 = vector.load %arg4[%c0_11, %c0_12, %c0_13] : memref<2x1x256xf32, #tpu.memory_space<vmem>>, vector<2x1x256xf32>
    %25 = arith.addf %24, %23 : vector<2x1x256xf32>
    %c0_14 = arith.constant 0 : index
    %c0_15 = arith.constant 0 : index
    %c0_16 = arith.constant 0 : index
    %26 = vector.load %arg4[%c0_14, %c0_15, %c0_16] : memref<2x1x256xf32, #tpu.memory_space<vmem>>, vector<2x1x256xf32>
    tpu.vector_store %arg4[%c0_14, %c0_15, %c0_16], %25 {strides = array<i32>} : memref<2x1x256xf32, #tpu.memory_space<vmem>>, vector<2x1x256xf32>,
    return
  }
  func.func @transform_0(%arg0: i32, %arg1: i32) -> (i32, i32, i32) {
    %c0_i32 = arith.constant 0 : i32
    %c0_i32_0 = arith.constant 0 : i32
    return %arg0, %c0_i32, %arg1 : i32, i32, i32
  }
  func.func @transform_1(%arg0: i32, %arg1: i32) -> (i32, i32, i32) {
    %c0_i32 = arith.constant 0 : i32
    %c0_i32_0 = arith.constant 0 : i32
    return %arg0, %c0_i32, %arg1 : i32, i32, i32
  }
  func.func @transform_2(%arg0: i32, %arg1: i32) -> (i32, i32, i32) {
    %c0_i32 = arith.constant 0 : i32
    %c0_i32_0 = arith.constant 0 : i32
    %c0_i32_1 = arith.constant 0 : i32
    return %arg0, %c0_i32, %c0_i32_0 : i32, i32, i32
  }
}

</mosaic_0001>

<llo_original>
// kernel: tpu_custom_call.1
$region0: #{tpu_custom_call.1}
  #allocation0 [shape = 'u32[]', space=smem, size = 0x4, offset = 0x4, fixed_abs, tag = 'smem constant byte address 0x4 - core index']
  #allocation1 [shape = 'u32[72,128]{1,0:T(1,128)}', space=vmem, size = 0x9000, scoped, tag = 'internal scratch']
  %s0 = inlined_call_operand.hbm [shape: f32[2,4,256], index: 0, kind: input, shape index: {}]
  %s1 = inlined_call_operand.hbm [shape: f32[2,4,256], index: 1, kind: input, shape index: {}]
  %s2 = inlined_call_operand.hbm [shape: f32[2,1,256], index: 2, kind: output, shape index: {}]
  %s3 = sld [smem:[#allocation0]]
  $region30: #{tpu_custom_call.1} parent=0
    _
  %s5 = ssub.s32 1, %s3
  %s6 = scalar_select 0, %s5, %s3
  $region1: #{tpu_custom_call.1} parent=0
    #allocation2 [shape = 'u8[8192]{0}', space=vmem, size = 0x2000, scoped, tag = 'input window, operand 0, single buffered']
    #allocation3 [shape = 's32[1]{0}', space=sflag, size = 0x4, scoped, tag = 'scoped memory for tpu_custom_call.1']
    #allocation4 [shape = 's32[1]{0}', space=sflag, size = 0x4, scoped, tag = 'scoped memory for tpu_custom_call.1']
    #allocation5 [shape = 'u8[8192]{0}', space=vmem, size = 0x2000, scoped, tag = 'input window, operand 1, single buffered']
    #allocation6 [shape = 's32[1]{0}', space=sflag, size = 0x4, scoped, tag = 'scoped memory for tpu_custom_call.1']
    #allocation7 [shape = 'u8[2048]{0}', space=vmem, size = 0x800, scoped, tag = 'output window, operand 0, single buffered']
    %7 = vsyncpa [#allocation3], 0
    %8 = vsyncpa [#allocation6], 0
    %9 = vsyncpa [#allocation4], 0
    // Predicated region
    $region2: #{tpu_custom_call.1} parent=1 // pred_check
      _
    $region3: #{tpu_custom_call.1} parent=1 // pred_check_branch
      %11 = sbr.rel (0) target = $region5
    $region4: #{tpu_custom_call.1} parent=1 // pred_region
      %13 = vsyncadd [#allocation3], 0
      %s14 = sshll.u32 %s0, 4
      %s15 = int_to_ptr.hbm [resolvable:$true] %s14
      %s16 = sshll.u32 [#allocation2], 4
      %s17 = int_to_ptr.vmem [resolvable:$true] %s16
      %22 = dma.hbm_to_vmem [thread:$0]  %s15, 256, %s17, [#allocation3], 128, 128, 8
    $region5: #{tpu_custom_call.1} parent=1 // pred_fallthru
      _
    // Predicated region
    $region6: #{tpu_custom_call.1} parent=1 // pred_check
      _
    $region7: #{tpu_custom_call.1} parent=1 // pred_check_branch
      %24 = sbr.rel (0) target = $region9
    $region8: #{tpu_custom_call.1} parent=1 // pred_region
      %26 = vsyncadd [#allocation6], 0
      %s27 = sshll.u32 %s1, 4
      %s28 = int_to_ptr.hbm [resolvable:$true] %s27
      %s29 = sshll.u32 [#allocation5], 4
      %s30 = int_to_ptr.vmem [resolvable:$true] %s29
      %35 = dma.hbm_to_vmem [thread:$0]  %s28, 256, %s30, [#allocation6], 128, 128, 8
    $region9: #{tpu_custom_call.1} parent=1 // pred_fallthru
      _
    // Predicated region
    $region10: #{tpu_custom_call.1} parent=1 // pred_check
      _
    $region11: #{tpu_custom_call.1} parent=1 // pred_check_branch
      %37 = sbr.rel (0) target = $region13
    $region12: #{tpu_custom_call.1} parent=1 // pred_region
      %39 = dma.done [#allocation3], 256
    $region13: #{tpu_custom_call.1} parent=1 // pred_fallthru
      _
    // Predicated region
    $region14: #{tpu_custom_call.1} parent=1 // pred_check
      _
    $region15: #{tpu_custom_call.1} parent=1 // pred_check_branch
      %41 = sbr.rel (0) target = $region17
    $region16: #{tpu_custom_call.1} parent=1 // pred_region
      %43 = dma.done [#allocation6], 256
    $region17: #{tpu_custom_call.1} parent=1 // pred_fallthru
      _
    %p44 = scmp.eq.s32.totalorder 0, 0
    // Predicated region
    $region18: #{tpu_custom_call.1} parent=1 // pred_check
      %p45 = pneg %p44
    $region19: #{tpu_custom_call.1} parent=1 // pred_check_branch
      %47 = sbr.rel (%p45) target = $region21
    $region20: #{tpu_custom_call.1} parent=1 // pred_region
      %v48 = vlaneseq
      %vm49 = vcmp.ge.s32.totalorder %v48, 0
      %vm50 = vcmp.lt.s32.totalorder %v48, 256
      %vm51 = vmand %vm49, %vm50
      %52 = vst.msk [vmem:[#allocation7] sm:$0x3] %vm51, 0.0
      %53 = vst.msk [vmem:[#allocation7 + $0x2] sm:$0x3] %vm51, 0.0
    $region21: #{tpu_custom_call.1} parent=1 // pred_fallthru
      _
    %v54 = vld [vmem:[#allocation2] sm:$0xff]
    %v55 = vld [vmem:[#allocation2 + $0x8] sm:$0xff]
    %v56 = vld [vmem:[#allocation5] sm:$0xff]
    %v57 = vld [vmem:[#allocation5 + $0x8] sm:$0xff]
    %v58 = vmul.f32 %v54, %v56
    %v59 = vmul.f32 %v55, %v57
    %62 = vst [vmem:[#allocation1] ss:$2 sm:$0xff] %v58
    %v63 = vld.sshfl [vmem:[#allocation1] sm:$0xff pattern:$0x75316420]
    %v64 = vld.sshfl [vmem:[#allocation1 + $0x8] sm:$0xff pattern:$0x75316420]
    %s65 = scalar_lea.vmem [#allocation1], 16
    %66 = vst [vmem:[%s65] ss:$2 sm:$0xff] %v59
    %v67 = vld.sshfl [vmem:[#allocation1 + $0x10] sm:$0xff pattern:$0x75316420]
    %v68 = vld.sshfl [vmem:[#allocation1 + $0x18] sm:$0xff pattern:$0x75316420]
    %vm73 = vcmask 1043456
    %v74 = vsel %vm73, %v63, 0.0
    %v75 = vrot.slane %v74, 4
    %v76 = vadd.f32 %v74, %v75
    %v77 = vrot.slane %v76, 2
    %v78 = vadd.f32 %v76, %v77
    %v79 = vrot.slane %v78, 1
    %v80 = vadd.f32 %v78, %v79
    %v81 = vsel %vm73, %v64, 0.0
    %v82 = vrot.slane %v81, 4
    %v83 = vadd.f32 %v81, %v82
    %v84 = vrot.slane %v83, 2
    %v85 = vadd.f32 %v83, %v84
    %v86 = vrot.slane %v85, 1
    %v87 = vadd.f32 %v85, %v86
    %v88 = vsel %vm73, %v67, 0.0
    %v89 = vrot.slane %v88, 4
    %v90 = vadd.f32 %v88, %v89
    %v91 = vrot.slane %v90, 2
    %v92 = vadd.f32 %v90, %v91
    %v93 = vrot.slane %v92, 1
    %v94 = vadd.f32 %v92, %v93
    %v95 = vsel %vm73, %v68, 0.0
    %v96 = vrot.slane %v95, 4
    %v97 = vadd.f32 %v95, %v96
    %v98 = vrot.slane %v97, 2
    %v99 = vadd.f32 %v97, %v98
    %v100 = vrot.slane %v99, 1
    %v101 = vadd.f32 %v99, %v100
    %v102 = vmul.f32 %v54, %v54
    %v103 = vmul.f32 %v55, %v55
    %106 = vst [vmem:[#allocation1] ss:$2 sm:$0xff] %v102
    %v107 = vld.sshfl [vmem:[#allocation1] sm:$0xff pattern:$0x75316420]
    %v108 = vld.sshfl [vmem:[#allocation1 + $0x8] sm:$0xff pattern:$0x75316420]
    %s109 = scalar_lea.vmem [#allocation1], 16
    %110 = vst [vmem:[%s109] ss:$2 sm:$0xff] %v103
    %v111 = vld.sshfl [vmem:[#allocation1 + $0x10] sm:$0xff pattern:$0x75316420]
    %v112 = vld.sshfl [vmem:[#allocation1 + $0x18] sm:$0xff pattern:$0x75316420]
    %v117 = vsel %vm73, %v107, 0.0
    %v118 = vrot.slane %v117, 4
    %v119 = vadd.f32 %v117, %v118
    %v120 = vrot.slane %v119, 2
    %v121 = vadd.f32 %v119, %v120
    %v122 = vrot.slane %v121, 1
    %v123 = vadd.f32 %v121, %v122
    %v124 = vsel %vm73, %v108, 0.0
    %v125 = vrot.slane %v124, 4
    %v126 = vadd.f32 %v124, %v125
    %v127 = vrot.slane %v126, 2
    %v128 = vadd.f32 %v126, %v127
    %v129 = vrot.slane %v128, 1
    %v130 = vadd.f32 %v128, %v129
    %v131 = vsel %vm73, %v111, 0.0
    %v132 = vrot.slane %v131, 4
    %v133 = vadd.f32 %v131, %v132
    %v134 = vrot.slane %v133, 2
    %v135 = vadd.f32 %v133, %v134
    %v136 = vrot.slane %v135, 1
    %v137 = vadd.f32 %v135, %v136
    %v138 = vsel %vm73, %v112, 0.0
    %v139 = vrot.slane %v138, 4
    %v140 = vadd.f32 %v138, %v139
    %v141 = vrot.slane %v140, 2
    %v142 = vadd.f32 %v140, %v141
    %v143 = vrot.slane %v142, 1
    %v144 = vadd.f32 %v142, %v143
    %v145 = vmul.f32 %v56, %v56
    %v146 = vmul.f32 %v57, %v57
    %149 = vst [vmem:[#allocation1] ss:$2 sm:$0xff] %v145
    %v150 = vld.sshfl [vmem:[#allocation1] sm:$0xff pattern:$0x75316420]
    %v151 = vld.sshfl [vmem:[#allocation1 + $0x8] sm:$0xff pattern:$0x75316420]
    %s152 = scalar_lea.vmem [#allocation1], 16
    %153 = vst [vmem:[%s152] ss:$2 sm:$0xff] %v146
    %v154 = vld.sshfl [vmem:[#allocation1 + $0x10] sm:$0xff pattern:$0x75316420]
    %v155 = vld.sshfl [vmem:[#allocation1 + $0x18] sm:$0xff pattern:$0x75316420]
    %v160 = vsel %vm73, %v150, 0.0
    %v161 = vrot.slane %v160, 4
    %v162 = vadd.f32 %v160, %v161
    %v163 = vrot.slane %v162, 2
    %v164 = vadd.f32 %v162, %v163
    %v165 = vrot.slane %v164, 1
    %v166 = vadd.f32 %v164, %v165
    %v167 = vsel %vm73, %v151, 0.0
    %v168 = vrot.slane %v167, 4
    %v169 = vadd.f32 %v167, %v168
    %v170 = vrot.slane %v169, 2
    %v171 = vadd.f32 %v169, %v170
    %v172 = vrot.slane %v171, 1
    %v173 = vadd.f32 %v171, %v172
    %v174 = vsel %vm73, %v154, 0.0
    %v175 = vrot.slane %v174, 4
    %v176 = vadd.f32 %v174, %v175
    %v177 = vrot.slane %v176, 2
    %v178 = vadd.f32 %v176, %v177
    %v179 = vrot.slane %v178, 1
    %v180 = vadd.f32 %v178, %v179
    %v181 = vsel %vm73, %v155, 0.0
    %v182 = vrot.slane %v181, 4
    %v183 = vadd.f32 %v181, %v182
    %v184 = vrot.slane %v183, 2
    %v185 = vadd.f32 %v183, %v184
    %v186 = vrot.slane %v185, 1
    %v187 = vadd.f32 %v185, %v186
    %v188 = vmax.f32 %v123, 1e-16
    %v189 = vmax.f32 %v130, 1e-16
    %v190 = vmax.f32 %v137, 1e-16
    %v191 = vmax.f32 %v144, 1e-16
    %v192 = vrsqrt.pop %v188
    %v193 = vmul.f32 %v192, %v188
    %v194 = vmul.f32 %v193, %v192
    %v195 = vmul.f32 0.5, %v194
    %v196 = vsub.f32 1.5, %v195
    %v197 = vmul.f32 %v192, %v196
    %vm198 = vweird.f32 %v188
    %vm199 = vweird.f32 %v192
    %vm200 = vmor %vm198, %vm199
    %v201 = vsel %vm200, %v192, %v197
    %v202 = vrsqrt.pop %v189
    %v203 = vmul.f32 %v202, %v189
    %v204 = vmul.f32 %v203, %v202
    %v205 = vmul.f32 0.5, %v204
    %v206 = vsub.f32 1.5, %v205
    %v207 = vmul.f32 %v202, %v206
    %vm208 = vweird.f32 %v189
    %vm209 = vweird.f32 %v202
    %vm210 = vmor %vm208, %vm209
    %v211 = vsel %vm210, %v202, %v207
    %v212 = vrsqrt.pop %v190
    %v213 = vmul.f32 %v212, %v190
    %v214 = vmul.f32 %v213, %v212
    %v215 = vmul.f32 0.5, %v214
    %v216 = vsub.f32 1.5, %v215
    %v217 = vmul.f32 %v212, %v216
    %vm218 = vweird.f32 %v190
    %vm219 = vweird.f32 %v212
    %vm220 = vmor %vm218, %vm219
    %v221 = vsel %vm220, %v212, %v217
    %v222 = vrsqrt.pop %v191
    %v223 = vmul.f32 %v222, %v191
    %v224 = vmul.f32 %v223, %v222
    %v225 = vmul.f32 0.5, %v224
    %v226 = vsub.f32 1.5, %v225
    %v227 = vmul.f32 %v222, %v226
    %vm228 = vweird.f32 %v191
    %vm229 = vweird.f32 %v222
    %vm230 = vmor %vm228, %vm229
    %v231 = vsel %vm230, %v222, %v227
    %v232 = vmax.f32 %v166, 1e-16
    %v233 = vmax.f32 %v173, 1e-16
    %v234 = vmax.f32 %v180, 1e-16
    %v235 = vmax.f32 %v187, 1e-16
    %v236 = vrsqrt.pop %v232
    %v237 = vmul.f32 %v236, %v232
    %v238 = vmul.f32 %v237, %v236
    %v239 = vmul.f32 0.5, %v238
    %v240 = vsub.f32 1.5, %v239
    %v241 = vmul.f32 %v236, %v240
    %vm242 = vweird.f32 %v232
    %vm243 = vweird.f32 %v236
    %vm244 = vmor %vm242, %vm243
    %v245 = vsel %vm244, %v236, %v241
    %v246 = vrsqrt.pop %v233
    %v247 = vmul.f32 %v246, %v233
    %v248 = vmul.f32 %v247, %v246
    %v249 = vmul.f32 0.5, %v248
    %v250 = vsub.f32 1.5, %v249
    %v251 = vmul.f32 %v246, %v250
    %vm252 = vweird.f32 %v233
    %vm253 = vweird.f32 %v246
    %vm254 = vmor %vm252, %vm253
    %v255 = vsel %vm254, %v246, %v251
    %v256 = vrsqrt.pop %v234
    %v257 = vmul.f32 %v256, %v234
    %v258 = vmul.f32 %v257, %v256
    %v259 = vmul.f32 0.5, %v258
    %v260 = vsub.f32 1.5, %v259
    %v261 = vmul.f32 %v256, %v260
    %vm262 = vweird.f32 %v234
    %vm263 = vweird.f32 %v256
    %vm264 = vmor %vm262, %vm263
    %v265 = vsel %vm264, %v256, %v261
    %v266 = vrsqrt.pop %v235
    %v267 = vmul.f32 %v266, %v235
    %v268 = vmul.f32 %v267, %v266
    %v269 = vmul.f32 0.5, %v268
    %v270 = vsub.f32 1.5, %v269
    %v271 = vmul.f32 %v266, %v270
    %vm272 = vweird.f32 %v235
    %vm273 = vweird.f32 %v266
    %vm274 = vmor %vm272, %vm273
    %v275 = vsel %vm274, %v266, %v271
    %v276 = vmul.f32 %v201, %v245
    %v277 = vmul.f32 %v211, %v255
    %v278 = vmul.f32 %v221, %v265
    %v279 = vmul.f32 %v231, %v275
    %v280 = vmul.f32 %v80, %v276
    %v281 = vmul.f32 %v87, %v277
    %v282 = vmul.f32 %v94, %v278
    %v283 = vmul.f32 %v101, %v279
    %v284 = vsub.f32 1.0, %v280
    %v285 = vsub.f32 1.0, %v281
    %v286 = vsub.f32 1.0, %v282
    %v287 = vsub.f32 1.0, %v283
    %v288 = vld [vmem:[#allocation7] sm:$0x3]
    %v289 = vld [vmem:[#allocation7 + $0x2] sm:$0x3]
    %v294 = vrot.slane %v285, 7
    %v295 = vrot.slane %v287, 7
    %vm296 = vcmask 1040384
    %v297 = vsel %vm296, %v284, %v294
    %v298 = vsel %vm296, %v286, %v295
    %v301 = vadd.f32 %v288, %v297
    %v302 = vadd.f32 %v289, %v298
    %v303 = vlaneseq
    %vm304 = vcmp.ge.s32.totalorder %v303, 0
    %vm305 = vcmp.lt.s32.totalorder %v303, 256
    %vm306 = vmand %vm304, %vm305
    %307 = vst.msk [vmem:[#allocation7] sm:$0x3] %vm306, %v301
    %308 = vst.msk [vmem:[#allocation7 + $0x2] sm:$0x3] %vm306, %v302
    // Predicated region
    $region22: #{tpu_custom_call.1} parent=1 // pred_check
      _
    $region23: #{tpu_custom_call.1} parent=1 // pred_check_branch
      %310 = sbr.rel (0) target = $region25
    $region24: #{tpu_custom_call.1} parent=1 // pred_region
      %312 = vsyncadd [#allocation4], 0
      %s313 = sshll.u32 [#allocation7], 4
      %s314 = int_to_ptr.vmem [resolvable:$true] %s313
      %s315 = sshll.u32 %s2, 4
      %s316 = int_to_ptr.hbm [resolvable:$true] %s315
      %321 = dma.vmem_to_hbm [thread:$0]  %s314, 64, %s316, [#allocation4], 32, 32, 2
    $region25: #{tpu_custom_call.1} parent=1 // pred_fallthru
      _
    // Predicated region
    $region26: #{tpu_custom_call.1} parent=1 // pred_check
      _
    $region27: #{tpu_custom_call.1} parent=1 // pred_check_branch
      %323 = sbr.rel (0) target = $region29
    $region28: #{tpu_custom_call.1} parent=1 // pred_region
      %325 = dma.done [#allocation4], 64
    $region29: #{tpu_custom_call.1} parent=1 // pred_fallthru
      _
    %326 = vsyncpa [#allocation3], 1
    %327 = vsyncpa [#allocation6], 1
    %328 = vsyncpa [#allocation4], 1

</llo_original>
